<compile_context>
chip_gen: v7x
topology: tpu7x:2x2x1
jax: 0.10.0
libtpu: 0.0.40
codegen_flags: <defaults>
</compile_context>

<pallas_src>
from typing import NamedTuple

import jax
import jax.numpy as jnp
from jax.experimental import pallas as pl
from jax.experimental.pallas import tpu as pltpu


def _round_up(x, m):
    return ((x + m - 1) // m) * m


def _device_kind():
    try:
        return jax.devices()[0].device_kind.lower()
    except Exception:
        return ""


def _lane_multiple():
    # v6e/v7x MXUs are 256x256; pad feature dims to 256 there (128 on v5e / unknown).
    kind = _device_kind()
    return 256 if ("v6" in kind or "v7" in kind) else 128


def _vmem_budget_bytes():
    kind = _device_kind()
    cap = (64 << 20) if "v7" in kind else (128 << 20)   # per-TensorCore on v7x
    return cap - (16 << 20)                             # headroom for compiler scratch


def _pad_dim(d, lane_mult):
    # Lane-dense: at least 128; full-MXU-width multiples for larger dims.
    if d <= 128:
        return _round_up(d, 128)
    return _round_up(d, lane_mult)


def _choose_tm(n, tm_max):
    """Row-tile size: minimize padded-row waste, prefer >=2 tiles for megacore."""
    n8 = _round_up(max(int(n), 1), 8)
    if n8 <= 256:
        return n8  # single small tile; splitting would not pay off
    cap = min(tm_max, _round_up((n8 + 1) // 2, 128))  # >=2 tiles -> both v7x TCs get work
    best = None
    for tm in (1024, 896, 768, 640, 512, 384, 256, 128):
        if tm > cap:
            continue
        waste = _round_up(n8, tm) - n8
        if best is None or waste < best[1] or (waste == best[1] and tm > best[0]):
            best = (tm, waste)
    return best[0] if best is not None else n8


def _resident_spec(shape):
    """BlockSpec for an operand that is identical for every grid step (DMA'd once)."""
    index_map = lambda i: (0,) * len(shape)
    try:
        # Constant index_map -> a second pipeline buffer is pure VMEM waste.
        return pl.BlockSpec(shape, index_map, pipeline_mode=pl.Buffered(1))
    except TypeError:
        return pl.BlockSpec(shape, index_map)


class FFNParams(NamedTuple):
    w1: jax.Array   # [fin_p, fin_p]
    b1: jax.Array   # [1, fin_p]
    w2: jax.Array   # [fin_p, fout_p]
    b2: jax.Array   # [1, fout_p]
    fin: int
    fout: int


def prepare_params(w1, b1, w2, b2, *, lane_multiple=None):
    """Pad weights/biases to lane-dense shapes ONCE (call at init, not per forward).

    Expects [in, out]-layout weights (i.e. already transposed vs. PyTorch's [out, in]).
    """
    fin = int(w1.shape[0])
    fout = int(w2.shape[1])
    if lane_multiple is None:
        lane_multiple = _lane_multiple()
    fin_p = _pad_dim(fin, lane_multiple)
    fout_p = _pad_dim(fout, lane_multiple)

    def pad2(a, rows, cols):
        a = a.reshape(a.shape if a.ndim == 2 else (1, -1))
        pr, pc = rows - a.shape[0], cols - a.shape[1]
        return a if (pr == 0 and pc == 0) else jnp.pad(a, ((0, pr), (0, pc)))

    return FFNParams(
        w1=pad2(w1, fin_p, fin_p),
        b1=pad2(b1, 1, fin_p),
        w2=pad2(w2, fin_p, fout_p),
        b2=pad2(b2, 1, fout_p),
        fin=fin,
        fout=fout,
    )


def ffn_kernel(x_ref, w1_ref, b1_ref, w2_ref, b2_ref, o_ref):
    # layer1: Linear(in, in) -> ReLU -> Dropout(p=0) (identity)
    x = x_ref[...]
    if x.dtype != w1_ref.dtype:           # wrapper already matches dtypes; no-op normally
        x = x.astype(w1_ref.dtype)
    h = jnp.dot(x, w1_ref[...], preferred_element_type=jnp.float32)
    h = jnp.maximum(h + b1_ref[...].astype(jnp.float32), 0.0)
    # Dropout(p=0) is an identity; see NotImplementedError in the wrapper for p > 0.
    # layer2: Linear(in, out)
    y = jnp.dot(h.astype(w2_ref.dtype), w2_ref[...], preferred_element_type=jnp.float32)
    y = y + b2_ref[...].astype(jnp.float32)
    o_ref[...] = y.astype(o_ref.dtype)


def feed_forward_network(x, params: FFNParams, *, tm_max=1024, dropout_p=0.0):
    """FeedForwardNetwork forward: relu(x @ w1 + b1) @ w2 + b2.

    x      : [N, Fin] activations (any float dtype; cast to the weight dtype for the MXU).
    params : FFNParams from prepare_params() (padded once, weight dtype bf16 recommended).
    """
    if dropout_p != 0.0:
        # TODO(synk): training-mode dropout (p>0) needs pltpu.prng_seed/prng_random_bits masking.
        raise NotImplementedError("dropout_p > 0 is not implemented (module default is 0).")

    n, fin = x.shape
    if fin != params.fin:
        raise ValueError(f"x has {fin} features, params expect {params.fin}")
    fin_p = params.w1.shape[0]
    fout_p = params.w2.shape[1]
    wdtype = params.w1.dtype
    out_dtype = x.dtype

    budget = _vmem_budget_bytes()
    resident_bytes = sum(int(a.size) * a.dtype.itemsize
                         for a in (params.w1, params.b1, params.w2, params.b2))
    xb = params.w1.dtype.itemsize          # x is fed to the kernel in the weight dtype
    ob = jnp.zeros((), out_dtype).dtype.itemsize

    def est_bytes(tm):
        e = 2 * tm * fin_p * xb            # x tile, double-buffered
        e += 2 * tm * fout_p * ob          # out tile, double-buffered
        e += resident_bytes                # weights/biases, single-buffered (Buffered(1))
        e += tm * fin_p * 4                # intermediate h in f32
        if wdtype != jnp.float32:
            e += tm * fin_p * params.w1.dtype.itemsize   # cast copy of h for the 2nd dot
        e += tm * fout_p * 4               # f32 result before the output cast
        return e

    tm_eff = _choose_tm(n, tm_max)
    while est_bytes(tm_eff) > budget and tm_eff > 128:
        tm_eff = max(128, _round_up(tm_eff // 2, 8))
    if est_bytes(tm_eff) > budget:
        # TODO(synk): very large Fin needs a K grid axis over Fin with an f32 VMEM accumulator
        #             (or two pallas_calls) instead of fully resident w1/w2 (v7x: 64 MiB/TC).
        raise ValueError("Resident weights do not fit in VMEM; use bf16 weights or a "
                         "K-blocked variant for this Fin.")

    n_p = _round_up(n, tm_eff)
    grid = (n_p // tm_eff,)
    vmem_limit = int(min(est_bytes(tm_eff) + (4 << 20), budget))

    # Only x is touched per call: cast to the weight dtype (free, it's folded into the
    # padding copy) and pad rows/features only if actually needed.
    x_in = x.astype(wdtype)
    if (n_p - n) or (fin_p - fin):
        x_in = jnp.pad(x_in, ((0, n_p - n), (0, fin_p - fin)))

    out = pl.pallas_call(
        ffn_kernel,
        out_shape=jax.ShapeDtypeStruct((n_p, fout_p), out_dtype),
        grid_spec=pltpu.PrefetchScalarGridSpec(
            num_scalar_prefetch=0,
            grid=grid,
            in_specs=[
                pl.BlockSpec((tm_eff, fin_p), lambda i: (i, 0)),   # x: pipelined row tile
                _resident_spec((fin_p, fin_p)),                    # w1: resident, single buffer
                _resident_spec((1, fin_p)),                        # b1
                _resident_spec((fin_p, fout_p)),                   # w2
                _resident_spec((1, fout_p)),                       # b2
            ],
            out_specs=pl.BlockSpec((tm_eff, fout_p), lambda i: (i, 0)),
        ),
        compiler_params=pltpu.CompilerParams(
            dimension_semantics=("parallel",),   # independent row tiles -> megacore on v7x
            vmem_limit_bytes=vmem_limit,
        ),
    )(x_in, params.w1, params.b1, params.w2, params.b2)

    if (n_p - n) or (fout_p - params.fout):
        out = out[:n, :params.fout]
    return out


def init_params(key, in_features, out_features, dtype=jnp.bfloat16):
    """nn.Linear-style uniform(-1/sqrt(fan_in), +1/sqrt(fan_in)) init, [in, out] layout.

    bf16 (default) is the recommended weight dtype on v5e/v6e/v7x: native MXU throughput,
    half the weight HBM traffic and half the resident VMEM. Use float32 as a fallback.
    """
    k1, k2, k3, k4 = jax.random.split(key, 4)
    bound = 1.0 / (in_features ** 0.5)
    w1 = jax.random.uniform(k1, (in_features, in_features), jnp.float32, -bound, bound).astype(dtype)
    b1 = jax.random.uniform(k2, (1, in_features), jnp.float32, -bound, bound).astype(dtype)
    w2 = jax.random.uniform(k3, (in_features, out_features), jnp.float32, -bound, bound).astype(dtype)
    b2 = jax.random.uniform(k4, (1, out_features), jnp.float32, -bound, bound).astype(dtype)
    return w1, b1, w2, b2


if __name__ == "__main__":
    key = jax.random.PRNGKey(0)
    kx, kp = jax.random.split(key)

    N, IN_FEATURES, OUT_FEATURES = 8, 32, 16
    x = jax.random.normal(kx, (N, IN_FEATURES), dtype=jnp.float32)

    # --- f32 parameters (compatibility path): tight correctness check vs pure-JAX reference ---
    w1, b1, w2, b2 = init_params(kp, IN_FEATURES, OUT_FEATURES, dtype=jnp.float32)
    params_f32 = prepare_params(w1, b1, w2, b2)
    out = jax.block_until_ready(feed_forward_network(x, params_f32))
    ref = jnp.maximum(x @ w1 + b1, 0.0) @ w2 + b2
    assert out.shape == (N, OUT_FEATURES)
    assert jnp.allclose(out, ref, atol=1e-4, rtol=1e-4), float(jnp.max(jnp.abs(out - ref)))

    # --- bf16 weights (recommended MXU path on v5e/v6e/v7x): looser tolerance ---
    w1b, b1b, w2b, b2b = (a.astype(jnp.bfloat16) for a in (w1, b1, w2, b2))
    params_bf16 = prepare_params(w1b, b1b, w2b, b2b)
    out_b = jax.block_until_ready(feed_forward_network(x, params_bf16))
    xb = x.astype(jnp.bfloat16).astype(jnp.float32)
    ref_b = (jnp.maximum(xb @ w1b.astype(jnp.float32) + b1b.astype(jnp.float32), 0.0)
             @ w2b.astype(jnp.float32) + b2b.astype(jnp.float32))
    assert out_b.shape == (N, OUT_FEATURES)
    assert jnp.allclose(out_b, ref_b, atol=5e-2, rtol=5e-2), float(jnp.max(jnp.abs(out_b - ref_b)))

    print("KERNEL_OK")
</pallas_src>

<mosaic_0001>
module attributes {stable_mosaic.version = 11 : i64} {
  func.func @ffn_kernel(%arg0: i32, %arg1: memref<8x128xf32, #tpu.memory_space<vmem>>, %arg2: memref<128x128xf32, #tpu.memory_space<vmem>>, %arg3: memref<1x128xf32, #tpu.memory_space<vmem>>, %arg4: memref<128x128xf32, #tpu.memory_space<vmem>>, %arg5: memref<1x128xf32, #tpu.memory_space<vmem>>, %arg6: memref<8x128xf32, #tpu.memory_space<vmem>>) attributes {dimension_semantics = [#tpu.dimension_semantics<parallel>], iteration_bounds = array<i64: 1>, scalar_prefetch = 0 : i64, scratch_operands = 0 : i64, tpu.core_type = #tpu.core_type<tc>, window_params = [{transform_indices = @transform_0, window_bounds = array<i64: 8, 128>}, {pipeline_mode = #tpu.pipeline_mode<synchronous>, transform_indices = @transform_1, window_bounds = array<i64: 128, 128>}, {pipeline_mode = #tpu.pipeline_mode<synchronous>, transform_indices = @transform_2, window_bounds = array<i64: 1, 128>}, {pipeline_mode = #tpu.pipeline_mode<synchronous>, transform_indices = @transform_3, window_bounds = array<i64: 128, 128>}, {pipeline_mode = #tpu.pipeline_mode<synchronous>, transform_indices = @transform_4, window_bounds = array<i64: 1, 128>}, {transform_indices = @transform_5, window_bounds = array<i64: 8, 128>}]} {
    %c0 = arith.constant 0 : index
    %c0_0 = arith.constant 0 : index
    %0 = vector.load %arg1[%c0, %c0_0] : memref<8x128xf32, #tpu.memory_space<vmem>>, vector<8x128xf32>
    %c0_1 = arith.constant 0 : index
    %c0_2 = arith.constant 0 : index
    %1 = vector.load %arg2[%c0_1, %c0_2] : memref<128x128xf32, #tpu.memory_space<vmem>>, vector<128x128xf32>
    %cst = arith.constant dense<0.000000e+00> : vector<8x128xf32>
    %2 = tpu.matmul %0, %1, %cst {dimension_numbers = #tpu.dot_dimension_numbers<[1], [0], [0], [1], [0, 0, 1, 1], [], []>} : vector<8x128xf32>, vector<128x128xf32>, vector<8x128xf32> -> vector<8x128xf32>
    %c0_3 = arith.constant 0 : index
    %c0_4 = arith.constant 0 : index
    %3 = vector.load %arg3[%c0_3, %c0_4] : memref<1x128xf32, #tpu.memory_space<vmem>>, vector<1x128xf32>
    %4 = vector.broadcast %3 : vector<1x128xf32> to vector<8x128xf32>
    %5 = arith.addf %2, %4 : vector<8x128xf32>
    %cst_5 = arith.constant 0.000000e+00 : f32
    %6 = vector.broadcast %cst_5 : f32 to vector<8x128xf32>
    %7 = arith.maximumf %5, %6 : vector<8x128xf32>
    %c0_6 = arith.constant 0 : index
    %c0_7 = arith.constant 0 : index
    %8 = vector.load %arg4[%c0_6, %c0_7] : memref<128x128xf32, #tpu.memory_space<vmem>>, vector<128x128xf32>
    %cst_8 = arith.constant dense<0.000000e+00> : vector<8x128xf32>
    %9 = tpu.matmul %7, %8, %cst_8 {dimension_numbers = #tpu.dot_dimension_numbers<[1], [0], [0], [1], [0, 0, 1, 1], [], []>} : vector<8x128xf32>, vector<128x128xf32>, vector<8x128xf32> -> vector<8x128xf32>
    %c0_9 = arith.constant 0 : index
    %c0_10 = arith.constant 0 : index
    %10 = vector.load %arg5[%c0_9, %c0_10] : memref<1x128xf32, #tpu.memory_space<vmem>>, vector<1x128xf32>
    %11 = vector.broadcast %10 : vector<1x128xf32> to vector<8x128xf32>
    %12 = arith.addf %9, %11 : vector<8x128xf32>
    %c0_11 = arith.constant 0 : index
    %c0_12 = arith.constant 0 : index
    %13 = vector.load %arg6[%c0_11, %c0_12] : memref<8x128xf32, #tpu.memory_space<vmem>>, vector<8x128xf32>
    tpu.vector_store %arg6[%c0_11, %c0_12], %12 {strides = array<i32>} : memref<8x128xf32, #tpu.memory_space<vmem>>, vector<8x128xf32>,
    return
  }
  func.func @transform_0(%arg0: i32) -> (i32, i32) {
    %c0_i32 = arith.constant 0 : i32
    %c0_i32_0 = arith.constant 0 : i32
    return %arg0, %c0_i32 : i32, i32
  }
  func.func @transform_1(%arg0: i32) -> (i32, i32) {
    %c0_i32 = arith.constant 0 : i32
    %c0_i32_0 = arith.constant 0 : i32
    %c0_i32_1 = arith.constant 0 : i32
    return %c0_i32, %c0_i32_0 : i32, i32
  }
  func.func @transform_2(%arg0: i32) -> (i32, i32) {
    %c0_i32 = arith.constant 0 : i32
    %c0_i32_0 = arith.constant 0 : i32
    %c0_i32_1 = arith.constant 0 : i32
    return %c0_i32, %c0_i32_0 : i32, i32
  }
  func.func @transform_3(%arg0: i32) -> (i32, i32) {
    %c0_i32 = arith.constant 0 : i32
    %c0_i32_0 = arith.constant 0 : i32
    %c0_i32_1 = arith.constant 0 : i32
    return %c0_i32, %c0_i32_0 : i32, i32
  }
  func.func @transform_4(%arg0: i32) -> (i32, i32) {
    %c0_i32 = arith.constant 0 : i32
    %c0_i32_0 = arith.constant 0 : i32
    %c0_i32_1 = arith.constant 0 : i32
    return %c0_i32, %c0_i32_0 : i32, i32
  }
  func.func @transform_5(%arg0: i32) -> (i32, i32) {
    %c0_i32 = arith.constant 0 : i32
    %c0_i32_0 = arith.constant 0 : i32
    return %arg0, %c0_i32 : i32, i32
  }
}

</mosaic_0001>

<llo_original>
// kernel: tpu_custom_call.1
$region0: #{tpu_custom_call.1}
  #allocation0 [shape = 'u32[]', space=smem, size = 0x4, offset = 0x4, fixed_abs, tag = 'smem constant byte address 0x4 - core index']
  #allocation1 [shape = 'u32[144,128]{1,0:T(1,128)}', space=vmem, size = 0x12000, scoped, tag = 'internal scratch']
  %s0 = inlined_call_operand.hbm [shape: f32[8,128], index: 0, kind: input, shape index: {}]
  %s1 = inlined_call_operand.hbm [shape: f32[128,128], index: 1, kind: input, shape index: {}]
  %s2 = inlined_call_operand.vmem [shape: f32[1,128], index: 2, kind: input, shape index: {}]
  %s3 = inlined_call_operand.hbm [shape: f32[128,128], index: 3, kind: input, shape index: {}]
  %s4 = inlined_call_operand.vmem [shape: f32[1,128], index: 4, kind: input, shape index: {}]
  %s5 = inlined_call_operand.hbm [shape: f32[8,128], index: 5, kind: output, shape index: {}]
  %s6 = sld [smem:[#allocation0]]
  $region42: #{tpu_custom_call.1} parent=0
    _
  %s8 = ssub.s32 1, %s6
  %s9 = scalar_select 0, %s8, %s6
  $region1: #{tpu_custom_call.1} parent=0
    #allocation2 [shape = 'u8[4096]{0}', space=vmem, size = 0x1000, scoped, tag = 'input window, operand 0, single buffered']
    #allocation3 [shape = 's32[1]{0}', space=sflag, size = 0x4, scoped, tag = 'scoped memory for tpu_custom_call.1']
    #allocation4 [shape = 's32[1]{0}', space=sflag, size = 0x4, scoped, tag = 'scoped memory for tpu_custom_call.1']
    #allocation5 [shape = 'u8[65536]{0}', space=vmem, size = 0x10000, scoped, tag = 'input window, operand 1, single buffered']
    #allocation6 [shape = 's32[1]{0}', space=sflag, size = 0x4, scoped, tag = 'scoped memory for tpu_custom_call.1']
    #allocation7 [shape = 'u8[65536]{0}', space=vmem, size = 0x10000, scoped, tag = 'input window, operand 3, single buffered']
    #allocation8 [shape = 'u8[4096]{0}', space=vmem, size = 0x1000, scoped, tag = 'output window, operand 0, single buffered']
    %10 = vsyncpa [#allocation3], 0
    %11 = vsyncpa [#allocation6], 0
    %12 = vsyncpa [#allocation4], 0
    // Predicated region
    $region2: #{tpu_custom_call.1} parent=1 // pred_check
      _
    $region3: #{tpu_custom_call.1} parent=1 // pred_check_branch
      %14 = sbr.rel (0) target = $region5
    $region4: #{tpu_custom_call.1} parent=1 // pred_region
      %s16 = ssub.s32 128, 128
      %17 = vsyncadd [#allocation3], %s16
      %s19 = sshll.u32 [#allocation2], 4
      %s20 = int_to_ptr.vmem [resolvable:$true] %s19
      %22 = dma.hbm_to_vmem [thread:$0]  %s0, 128, %s20, [#allocation3]
    $region5: #{tpu_custom_call.1} parent=1 // pred_fallthru
      _
    // Predicated region
    $region6: #{tpu_custom_call.1} parent=1 // pred_check
      _
    $region7: #{tpu_custom_call.1} parent=1 // pred_check_branch
      %24 = sbr.rel (0) target = $region9
    $region8: #{tpu_custom_call.1} parent=1 // pred_region
      %s26 = ssub.s32 2048, 2048
      %27 = vsyncadd [#allocation6], %s26
      %s28 = sshll.u32 [#allocation5], 4
      %s29 = int_to_ptr.vmem [resolvable:$true] %s28
      %34 = dma.hbm_to_vmem [thread:$0]  %s1, 2048, %s29, [#allocation6], 128, 128, 8
    $region9: #{tpu_custom_call.1} parent=1 // pred_fallthru
      _
    // Predicated region
    $region10: #{tpu_custom_call.1} parent=1 // pred_check
      _
    $region11: #{tpu_custom_call.1} parent=1 // pred_check_branch
      %36 = sbr.rel (0) target = $region13
    $region12: #{tpu_custom_call.1} parent=1 // pred_region
      _
    $region13: #{tpu_custom_call.1} parent=1 // pred_fallthru
      _
    // Predicated region
    $region14: #{tpu_custom_call.1} parent=1 // pred_check
      _
    $region15: #{tpu_custom_call.1} parent=1 // pred_check_branch
      %38 = sbr.rel (0) target = $region17
    $region16: #{tpu_custom_call.1} parent=1 // pred_region
      %s40 = ssub.s32 2048, 2048
      %41 = vsyncadd [#allocation6], %s40
      %s42 = sshll.u32 [#allocation7], 4
      %s43 = int_to_ptr.vmem [resolvable:$true] %s42
      %48 = dma.hbm_to_vmem [thread:$0]  %s3, 2048, %s43, [#allocation6], 128, 128, 8
    $region17: #{tpu_custom_call.1} parent=1 // pred_fallthru
      _
    // Predicated region
    $region18: #{tpu_custom_call.1} parent=1 // pred_check
      _
    $region19: #{tpu_custom_call.1} parent=1 // pred_check_branch
      %50 = sbr.rel (0) target = $region21
    $region20: #{tpu_custom_call.1} parent=1 // pred_region
      _
    $region21: #{tpu_custom_call.1} parent=1 // pred_fallthru
      _
    // Predicated region
    $region22: #{tpu_custom_call.1} parent=1 // pred_check
      _
    $region23: #{tpu_custom_call.1} parent=1 // pred_check_branch
      %52 = sbr.rel (0) target = $region25
    $region24: #{tpu_custom_call.1} parent=1 // pred_region
      %53 = dma.done [#allocation3], 128
    $region25: #{tpu_custom_call.1} parent=1 // pred_fallthru
      _
    // Predicated region
    $region26: #{tpu_custom_call.1} parent=1 // pred_check
      _
    $region27: #{tpu_custom_call.1} parent=1 // pred_check_branch
      %55 = sbr.rel (0) target = $region29
    $region28: #{tpu_custom_call.1} parent=1 // pred_region
      %56 = dma.done [#allocation6], 2048
    $region29: #{tpu_custom_call.1} parent=1 // pred_fallthru
      _
    // Predicated region
    $region30: #{tpu_custom_call.1} parent=1 // pred_check
      _
    $region31: #{tpu_custom_call.1} parent=1 // pred_check_branch
      %58 = sbr.rel (0) target = $region33
    $region32: #{tpu_custom_call.1} parent=1 // pred_region
      %59 = dma.done [#allocation6], 2048
    $region33: #{tpu_custom_call.1} parent=1 // pred_fallthru
      _
    %v60 = vld [vmem:[#allocation2] sm:$0xff]
    %v61 = vld [vmem:[#allocation5] sm:$0xff]
    %v62 = vld [vmem:[#allocation5 + $0x8] sm:$0xff]
    %v63 = vld [vmem:[#allocation5 + $0x10] sm:$0xff]
    %v64 = vld [vmem:[#allocation5 + $0x18] sm:$0xff]
    %v65 = vld [vmem:[#allocation5 + $0x20] sm:$0xff]
    %v66 = vld [vmem:[#allocation5 + $0x28] sm:$0xff]
    %v67 = vld [vmem:[#allocation5 + $0x30] sm:$0xff]
    %v68 = vld [vmem:[#allocation5 + $0x38] sm:$0xff]
    %v69 = vld [vmem:[#allocation5 + $0x40] sm:$0xff]
    %v70 = vld [vmem:[#allocation5 + $0x48] sm:$0xff]
    %v71 = vld [vmem:[#allocation5 + $0x50] sm:$0xff]
    %v72 = vld [vmem:[#allocation5 + $0x58] sm:$0xff]
    %v73 = vld [vmem:[#allocation5 + $0x60] sm:$0xff]
    %v74 = vld [vmem:[#allocation5 + $0x68] sm:$0xff]
    %v75 = vld [vmem:[#allocation5 + $0x70] sm:$0xff]
    %v76 = vld [vmem:[#allocation5 + $0x78] sm:$0xff]
    %v77 = vld [vmem:[%s2] sm:$0x1]
    %v79 = vlaneseq
    %v80 = vshrl.u32 %v79, 7
    %v81 = vsub.s32 0, %v80
    %v82 = vrot.slane %v77, %v81
    %84 = vmatprep.subr.mxu0 0.0
    %85 = vmatpush1.msra.mxu0 %v61
    %86 = vmatprep.subr.mxu0 0.0
    %87 = vmatpush1.msra.mxu0 %v62
    %88 = vmatprep.subr.mxu0 0.0
    %89 = vmatpush1.msra.mxu0 %v63
    %90 = vmatprep.subr.mxu0 0.0
    %91 = vmatpush1.msra.mxu0 %v64
    %92 = vmatprep.subr.mxu0 0.0
    %93 = vmatpush1.msra.mxu0 %v65
    %94 = vmatprep.subr.mxu0 0.0
    %95 = vmatpush1.msra.mxu0 %v66
    %96 = vmatprep.subr.mxu0 0.0
    %97 = vmatpush1.msra.mxu0 %v67
    %98 = vmatprep.subr.mxu0 0.0
    %99 = vmatpush1.msra.mxu0 %v68
    %100 = vmatprep.subr.mxu0 0.0
    %101 = vmatpush1.msra.mxu0 %v69
    %102 = vmatprep.subr.mxu0 0.0
    %103 = vmatpush1.msra.mxu0 %v70
    %104 = vmatprep.subr.mxu0 0.0
    %105 = vmatpush1.msra.mxu0 %v71
    %106 = vmatprep.subr.mxu0 0.0
    %107 = vmatpush1.msra.mxu0 %v72
    %108 = vmatprep.subr.mxu0 0.0
    %109 = vmatpush1.msra.mxu0 %v73
    %110 = vmatprep.subr.mxu0 0.0
    %111 = vmatpush1.msra.mxu0 %v74
    %112 = vmatprep.subr.mxu0 0.0
    %113 = vmatpush1.msra.mxu0 %v75
    %114 = vmatprep.subr.mxu0 0.0
    %115 = vmatpush1.msra.mxu0 %v76
    %116 = vmatprep.subr.mxu0 0.0
    %117 = vmatpush1.msra.mxu0 0.0
    %118 = vmatprep.subr.mxu0 0.0
    %119 = vmatpush1.msra.mxu0 0.0
    %120 = vmatprep.subr.mxu0 0.0
    %121 = vmatpush1.msra.mxu0 0.0
    %122 = vmatprep.subr.mxu0 0.0
    %123 = vmatpush1.msra.mxu0 0.0
    %124 = vmatprep.subr.mxu0 0.0
    %125 = vmatpush1.msra.mxu0 0.0
    %126 = vmatprep.subr.mxu0 0.0
    %127 = vmatpush1.msra.mxu0 0.0
    %128 = vmatprep.subr.mxu0 0.0
    %129 = vmatpush1.msra.mxu0 0.0
    %130 = vmatprep.subr.mxu0 0.0
    %131 = vmatpush1.msra.mxu0 0.0
    %132 = vmatprep.subr.mxu0 0.0
    %133 = vmatpush1.msra.mxu0 0.0
    %134 = vmatprep.subr.mxu0 0.0
    %135 = vmatpush1.msra.mxu0 0.0
    %136 = vmatprep.subr.mxu0 0.0
    %137 = vmatpush1.msra.mxu0 0.0
    %138 = vmatprep.subr.mxu0 0.0
    %139 = vmatpush1.msra.mxu0 0.0
    %140 = vmatprep.subr.mxu0 0.0
    %141 = vmatpush1.msra.mxu0 0.0
    %142 = vmatprep.subr.mxu0 0.0
    %143 = vmatpush1.msra.mxu0 0.0
    %144 = vmatprep.subr.mxu0 0.0
    %145 = vmatpush1.msra.mxu0 0.0
    %146 = vmatprep.subr.mxu0 0.0
    %147 = vmatpush1.msra.mxu0 0.0
    %148 = vmatprep.mubr.f32.mxu0 0.0
    %149 = vmatmul.mubr.f32.gmra.mrb[0].mxu0 %v60
    %v150 = vpop.f32.mrb[0].mxu0
    %v151 = vadd.f32 %v82, %v150
    %v152 = vpop.f32.mrb[0].mxu0
    %153 = vdwg.mxu0
    %v154 = vmax.f32 %v151, 0.0
    %v155 = vld [vmem:[#allocation7] sm:$0xff]
    %v156 = vld [vmem:[#allocation7 + $0x8] sm:$0xff]
    %v157 = vld [vmem:[#allocation7 + $0x10] sm:$0xff]
    %v158 = vld [vmem:[#allocation7 + $0x18] sm:$0xff]
    %v159 = vld [vmem:[#allocation7 + $0x20] sm:$0xff]
    %v160 = vld [vmem:[#allocation7 + $0x28] sm:$0xff]
    %v161 = vld [vmem:[#allocation7 + $0x30] sm:$0xff]
    %v162 = vld [vmem:[#allocation7 + $0x38] sm:$0xff]
    %v163 = vld [vmem:[#allocation7 + $0x40] sm:$0xff]
    %v164 = vld [vmem:[#allocation7 + $0x48] sm:$0xff]
    %v165 = vld [vmem:[#allocation7 + $0x50] sm:$0xff]
    %v166 = vld [vmem:[#allocation7 + $0x58] sm:$0xff]
    %v167 = vld [vmem:[#allocation7 + $0x60] sm:$0xff]
    %v168 = vld [vmem:[#allocation7 + $0x68] sm:$0xff]
    %v169 = vld [vmem:[#allocation7 + $0x70] sm:$0xff]
    %v170 = vld [vmem:[#allocation7 + $0x78] sm:$0xff]
    %v171 = vld [vmem:[%s4] sm:$0x1]
    %v173 = vlaneseq
    %v174 = vshrl.u32 %v173, 7
    %v175 = vsub.s32 0, %v174
    %v176 = vrot.slane %v171, %v175
    %178 = vmatprep.subr.mxu0 0.0
    %179 = vmatpush1.msra.mxu0 %v155
    %180 = vmatprep.subr.mxu0 0.0
    %181 = vmatpush1.msra.mxu0 %v156
    %182 = vmatprep.subr.mxu0 0.0
    %183 = vmatpush1.msra.mxu0 %v157
    %184 = vmatprep.subr.mxu0 0.0
    %185 = vmatpush1.msra.mxu0 %v158
    %186 = vmatprep.subr.mxu0 0.0
    %187 = vmatpush1.msra.mxu0 %v159
    %188 = vmatprep.subr.mxu0 0.0
    %189 = vmatpush1.msra.mxu0 %v160
    %190 = vmatprep.subr.mxu0 0.0
    %191 = vmatpush1.msra.mxu0 %v161
    %192 = vmatprep.subr.mxu0 0.0
    %193 = vmatpush1.msra.mxu0 %v162
    %194 = vmatprep.subr.mxu0 0.0
    %195 = vmatpush1.msra.mxu0 %v163
    %196 = vmatprep.subr.mxu0 0.0
    %197 = vmatpush1.msra.mxu0 %v164
    %198 = vmatprep.subr.mxu0 0.0
    %199 = vmatpush1.msra.mxu0 %v165
    %200 = vmatprep.subr.mxu0 0.0
    %201 = vmatpush1.msra.mxu0 %v166
    %202 = vmatprep.subr.mxu0 0.0
    %203 = vmatpush1.msra.mxu0 %v167
    %204 = vmatprep.subr.mxu0 0.0
    %205 = vmatpush1.msra.mxu0 %v168
    %206 = vmatprep.subr.mxu0 0.0
    %207 = vmatpush1.msra.mxu0 %v169
    %208 = vmatprep.subr.mxu0 0.0
    %209 = vmatpush1.msra.mxu0 %v170
    %210 = vmatprep.subr.mxu0 0.0
    %211 = vmatpush1.msra.mxu0 0.0
    %212 = vmatprep.subr.mxu0 0.0
    %213 = vmatpush1.msra.mxu0 0.0
    %214 = vmatprep.subr.mxu0 0.0
    %215 = vmatpush1.msra.mxu0 0.0
    %216 = vmatprep.subr.mxu0 0.0
    %217 = vmatpush1.msra.mxu0 0.0
    %218 = vmatprep.subr.mxu0 0.0
    %219 = vmatpush1.msra.mxu0 0.0
    %220 = vmatprep.subr.mxu0 0.0
    %221 = vmatpush1.msra.mxu0 0.0
    %222 = vmatprep.subr.mxu0 0.0
    %223 = vmatpush1.msra.mxu0 0.0
    %224 = vmatprep.subr.mxu0 0.0
    %225 = vmatpush1.msra.mxu0 0.0
    %226 = vmatprep.subr.mxu0 0.0
    %227 = vmatpush1.msra.mxu0 0.0
    %228 = vmatprep.subr.mxu0 0.0
    %229 = vmatpush1.msra.mxu0 0.0
    %230 = vmatprep.subr.mxu0 0.0
    %231 = vmatpush1.msra.mxu0 0.0
    %232 = vmatprep.subr.mxu0 0.0
    %233 = vmatpush1.msra.mxu0 0.0
    %234 = vmatprep.subr.mxu0 0.0
    %235 = vmatpush1.msra.mxu0 0.0
    %236 = vmatprep.subr.mxu0 0.0
    %237 = vmatpush1.msra.mxu0 0.0
    %238 = vmatprep.subr.mxu0 0.0
    %239 = vmatpush1.msra.mxu0 0.0
    %240 = vmatprep.subr.mxu0 0.0
    %241 = vmatpush1.msra.mxu0 0.0
    %242 = vmatprep.mubr.f32.mxu0 0.0
    %243 = vmatmul.mubr.f32.gmra.mrb[0].mxu0 %v154
    %v244 = vpop.f32.mrb[0].mxu0
    %v245 = vadd.f32 %v176, %v244
    %v246 = vpop.f32.mrb[0].mxu0
    %247 = vdwg.mxu0
    %248 = vst [vmem:[#allocation8] sm:$0xff] %v245
    // Predicated region
    $region34: #{tpu_custom_call.1} parent=1 // pred_check
      _
    $region35: #{tpu_custom_call.1} parent=1 // pred_check_branch
      %250 = sbr.rel (0) target = $region37
    $region36: #{tpu_custom_call.1} parent=1 // pred_region
      %s252 = ssub.s32 128, 128
      %253 = vsyncadd [#allocation4], %s252
      %s255 = sshll.u32 [#allocation8], 4
      %s256 = int_to_ptr.vmem [resolvable:$true] %s255
      %258 = dma.vmem_to_hbm [thread:$0]  %s256, 128, %s5, [#allocation4]
    $region37: #{tpu_custom_call.1} parent=1 // pred_fallthru
      _
    // Predicated region
    $region38: #{tpu_custom_call.1} parent=1 // pred_check
      _
    $region39: #{tpu_custom_call.1} parent=1 // pred_check_branch
      %260 = sbr.rel (0) target = $region41
    $region40: #{tpu_custom_call.1} parent=1 // pred_region
      %261 = dma.done [#allocation4], 128
    $region41: #{tpu_custom_call.1} parent=1 // pred_fallthru
      _
    %262 = vsyncpa [#allocation3], 1
    %263 = vsyncpa [#allocation6], 1
    %264 = vsyncpa [#allocation4], 1

</llo_original>
